<compile_context>
chip_gen: v7x
topology: tpu7x:2x2x1
jax: 0.10.0
libtpu: 0.0.40
codegen_flags: <defaults>
</compile_context>

<pallas_src>
import math
from functools import partial

import jax
import jax.numpy as jnp
from jax.experimental import pallas as pl
from jax.experimental.pallas import tpu as pltpu


# ------------------------------ tiling helpers -------------------------------

def _row_tile(m, max_tile=256):
    """Largest tile <= max_tile that divides m (prefers multiples of 8)."""
    t = min(m, max_tile)
    while t > 1 and m % t != 0:
        t -= 8 if t > 8 else 1
    return max(t, 1)


# ------------------------------- Pallas kernels -------------------------------

def _linear_bias_kernel(x_ref, w_ref, b_ref, o_ref):
    # o = x @ w + b    x:[tm,K] bf16, w:[K,N] bf16, b:[1,N] f32
    acc = jnp.dot(x_ref[...], w_ref[...], preferred_element_type=jnp.float32)
    o_ref[...] = (acc + b_ref[...]).astype(o_ref.dtype)


def _proj_add_ln_kernel(y_ref, w_ref, b_ref, res_ref, g_ref, beta_ref, o_ref):
    # o = LayerNorm(res + y @ w + b) * g + beta     (eps = 1e-5)
    h = jnp.dot(y_ref[...], w_ref[...], preferred_element_type=jnp.float32) + b_ref[...]
    x = h + res_ref[...].astype(jnp.float32)
    mu = jnp.mean(x, axis=-1, keepdims=True)
    var = jnp.mean((x - mu) ** 2, axis=-1, keepdims=True)
    o_ref[...] = ((x - mu) * jax.lax.rsqrt(var + 1e-5) * g_ref[...]
                  + beta_ref[...]).astype(o_ref.dtype)


def _mlp_add_ln_kernel(x_ref, w1_ref, b1_ref, w2_ref, b2_ref, g_ref, beta_ref, o_ref):
    # o = LayerNorm(x + gelu(x @ w1 + b1) @ w2 + b2) * g + beta
    # TODO(synk): PyTorch nn.GELU default is the exact erf form; tanh approx used here.
    # TODO(synk): for large mlp_dim on v7x (64 MiB VMEM), tile F as a reduction axis
    #             instead of holding the full [tm, F] GELU intermediate.
    h = jnp.dot(x_ref[...], w1_ref[...], preferred_element_type=jnp.float32) + b1_ref[...]
    h = jax.nn.gelu(h, approximate=True)
    y = (jnp.dot(h.astype(w2_ref.dtype), w2_ref[...],
                 preferred_element_type=jnp.float32) + b2_ref[...])
    x = y + x_ref[...].astype(jnp.float32)
    mu = jnp.mean(x, axis=-1, keepdims=True)
    var = jnp.mean((x - mu) ** 2, axis=-1, keepdims=True)
    o_ref[...] = ((x - mu) * jax.lax.rsqrt(var + 1e-5) * g_ref[...]
                  + beta_ref[...]).astype(o_ref.dtype)


def _flash_attn_kernel(q_ref, k_ref, v_ref, mask_ref, o_ref,
                       m_sc, l_sc, acc_sc, *, scale):
    # q,k,v blocks: [1,1,tq,Dh] / [1,1,tkv,Dh]; mask block: [1,1,tkv] (additive, f32)
    kv = pl.program_id(3)

    @pl.when(kv == 0)
    def _():
        m_sc[...] = jnp.full_like(m_sc, -jnp.inf)
        l_sc[...] = jnp.zeros_like(l_sc)
        acc_sc[...] = jnp.zeros_like(acc_sc)

    q = q_ref[0, 0] * scale                       # scale q (O(S*Dh)), not scores
    k = k_ref[0, 0]
    v = v_ref[0, 0]
    s = jax.lax.dot_general(q, k, (((1,), (1,)), ((), ())),
                            preferred_element_type=jnp.float32)        # [tq, tkv]
    s = s + mask_ref[0]                            # broadcast key mask over q rows

    m_prev = m_sc[...]
    m_new = jnp.maximum(m_prev, jnp.max(s, axis=-1, keepdims=True))
    alpha = jnp.exp(m_prev - m_new)
    p = jnp.exp(s - m_new)
    l_sc[...] = alpha * l_sc[...] + jnp.sum(p, axis=-1, keepdims=True)
    acc_sc[...] = alpha * acc_sc[...] + jnp.dot(p.astype(v.dtype), v,
                                                preferred_element_type=jnp.float32)
    m_sc[...] = m_new

    @pl.when(kv == pl.num_programs(3) - 1)
    def _():
        o_ref[0, 0] = (acc_sc[...] *
                       pl.reciprocal(l_sc[...], approx=True)).astype(o_ref.dtype)


# ------------------------------ Pallas wrappers -------------------------------

def linear(x, w, b, out_dtype=None):
    M, K = x.shape
    N = w.shape[1]
    tm = _row_tile(M)
    out_dtype = out_dtype or x.dtype
    return pl.pallas_call(
        _linear_bias_kernel,
        out_shape=jax.ShapeDtypeStruct((M, N), out_dtype),
        grid=(M // tm,),
        in_specs=[pl.BlockSpec((tm, K), lambda i: (i, 0)),
                  pl.BlockSpec((K, N), lambda i: (0, 0)),
                  pl.BlockSpec((1, N), lambda i: (0, 0))],
        out_specs=pl.BlockSpec((tm, N), lambda i: (i, 0)),
        compiler_params=pltpu.CompilerParams(dimension_semantics=("parallel",)),
    )(x, w, b)


def proj_add_layernorm(y, w, b, res, gamma, beta):
    M, K = y.shape
    H = w.shape[1]
    tm = _row_tile(M)
    return pl.pallas_call(
        _proj_add_ln_kernel,
        out_shape=jax.ShapeDtypeStruct((M, H), res.dtype),
        grid=(M // tm,),
        in_specs=[pl.BlockSpec((tm, K), lambda i: (i, 0)),
                  pl.BlockSpec((K, H), lambda i: (0, 0)),
                  pl.BlockSpec((1, H), lambda i: (0, 0)),
                  pl.BlockSpec((tm, H), lambda i: (i, 0)),
                  pl.BlockSpec((1, H), lambda i: (0, 0)),
                  pl.BlockSpec((1, H), lambda i: (0, 0))],
        out_specs=pl.BlockSpec((tm, H), lambda i: (i, 0)),
        compiler_params=pltpu.CompilerParams(dimension_semantics=("parallel",)),
    )(y, w, b, res, gamma, beta)


def mlp_add_layernorm(x, w1, b1, w2, b2, gamma, beta):
    M, H = x.shape
    F = w1.shape[1]
    tm = _row_tile(M)
    return pl.pallas_call(
        _mlp_add_ln_kernel,
        out_shape=jax.ShapeDtypeStruct((M, H), x.dtype),
        grid=(M // tm,),
        in_specs=[pl.BlockSpec((tm, H), lambda i: (i, 0)),
                  pl.BlockSpec((H, F), lambda i: (0, 0)),
                  pl.BlockSpec((1, F), lambda i: (0, 0)),
                  pl.BlockSpec((F, H), lambda i: (0, 0)),
                  pl.BlockSpec((1, H), lambda i: (0, 0)),
                  pl.BlockSpec((1, H), lambda i: (0, 0)),
                  pl.BlockSpec((1, H), lambda i: (0, 0))],
        out_specs=pl.BlockSpec((tm, H), lambda i: (i, 0)),
        compiler_params=pltpu.CompilerParams(dimension_semantics=("parallel",)),
    )(x, w1, b1, w2, b2, gamma, beta)


def flash_attention(q, k, v, add_mask, head_dim):
    # q, k, v: [B, nH, S, Dh]; add_mask: [B, 1, S] f32 (0 or -1e9 on padded keys)
    B, nH, S, Dh = q.shape
    tq = _row_tile(S, 128)
    tkv = _row_tile(S, 128)
    scale = 1.0 / math.sqrt(head_dim)
    return pl.pallas_call(
        partial(_flash_attn_kernel, scale=scale),
        out_shape=jax.ShapeDtypeStruct((B, nH, S, Dh), q.dtype),
        grid=(B, nH, S // tq, S // tkv),
        in_specs=[pl.BlockSpec((1, 1, tq, Dh), lambda b, h, qi, ki: (b, h, qi, 0)),
                  pl.BlockSpec((1, 1, tkv, Dh), lambda b, h, qi, ki: (b, h, ki, 0)),
                  pl.BlockSpec((1, 1, tkv, Dh), lambda b, h, qi, ki: (b, h, ki, 0)),
                  pl.BlockSpec((1, 1, tkv), lambda b, h, qi, ki: (b, 0, ki))],
        out_specs=pl.BlockSpec((1, 1, tq, Dh), lambda b, h, qi, ki: (b, h, qi, 0)),
        scratch_shapes=[pltpu.VMEM((tq, 1), jnp.float32),
                        pltpu.VMEM((tq, 1), jnp.float32),
                        pltpu.VMEM((tq, Dh), jnp.float32)],
        compiler_params=pltpu.CompilerParams(
            dimension_semantics=("parallel", "parallel", "parallel", "arbitrary")),
    )(q, k, v, add_mask)


# ------------------------------- parameter setup ------------------------------

def _sinusoidal_pos_table(max_len, embed_dim):
    pos = jnp.arange(max_len, dtype=jnp.float32)[:, None]
    i = jnp.arange(embed_dim, dtype=jnp.float32)[None, :]
    angle = pos / jnp.power(10000.0, (2.0 * jnp.floor(i / 2.0)) / embed_dim)
    pe = jnp.where((jnp.arange(embed_dim) % 2) == 0, jnp.sin(angle), jnp.cos(angle))
    return pe.astype(jnp.float32)  # [max_len, embed_dim]


def init_params(key, *, vocab_size, n_layers, hidden_dim, mlp_dim, embed_dim,
                n_heads, pad_idx=0, n_segments=3, max_len=512):
    w_dt = jnp.bfloat16
    keys = jax.random.split(key, 8 + 8 * n_layers)
    ki = iter(keys)

    def dense(k, fan_in, fan_out):
        w = (jax.random.normal(k, (fan_in, fan_out), jnp.float32) * 0.02).astype(w_dt)
        b = jnp.zeros((1, fan_out), jnp.float32)
        return w, b

    params = {}
    tok = jax.random.normal(next(ki), (vocab_size, embed_dim), jnp.float32) * 0.02
    params["token_embed"] = tok.at[pad_idx].set(0.0)          # padding_idx row = 0
    seg = jax.random.normal(next(ki), (n_segments, embed_dim), jnp.float32) * 0.02
    params["seg_embed"] = seg.at[pad_idx].set(0.0)
    params["pos_table"] = _sinusoidal_pos_table(max_len, embed_dim)

    if hidden_dim != embed_dim:
        params["embed_proj_w"], params["embed_proj_b"] = dense(next(ki), embed_dim, hidden_dim)

    layers = []
    for _ in range(n_layers):
        p = {}
        p["wqkv"], p["bqkv"] = dense(next(ki), hidden_dim, 3 * hidden_dim)  # fused q|k|v
        p["wo"], p["bo"] = dense(next(ki), hidden_dim, hidden_dim)
        p["w1"], p["b1"] = dense(next(ki), hidden_dim, mlp_dim)
        p["w2"], p["b2"] = dense(next(ki), mlp_dim, hidden_dim)
        p["ln1_g"] = jnp.ones((1, hidden_dim), jnp.float32)
        p["ln1_b"] = jnp.zeros((1, hidden_dim), jnp.float32)
        p["ln2_g"] = jnp.ones((1, hidden_dim), jnp.float32)
        p["ln2_b"] = jnp.zeros((1, hidden_dim), jnp.float32)
        layers.append(p)
    params["layers"] = layers

    # RTD head: pad N=2 -> 128 to keep the output store lane-dense; slice after.
    cls_w, cls_b = dense(next(ki), hidden_dim, 2)
    params["cls_w_pad"] = jnp.zeros((hidden_dim, 128), w_dt).at[:, :2].set(cls_w)
    params["cls_b_pad"] = jnp.zeros((1, 128), jnp.float32).at[:, :2].set(cls_b)
    return params


# -------------------------------- forward pass --------------------------------

def discriminator_forward(params, seq, seg_ids, *, hidden_dim, embed_dim,
                          n_heads, n_layers, pad_idx=0):
    B, S = seq.shape
    H, E, nH = hidden_dim, embed_dim, n_heads
    Dh = H // nH
    M = B * S
    act_dt = jnp.bfloat16

    # --- embeddings ---
    # TODO(synk): token/segment gathers are data-dependent row fetches; kept in
    # plain JAX (a Pallas version would need scalar-prefetch row DMA).
    x = params["token_embed"][seq]                        # [B,S,E]
    x = x + params["pos_table"][:S][None, :, :]           # position embedding
    x = x + params["seg_embed"][seg_ids]                  # segment embedding
    x = x.astype(act_dt)
    # dropout: identity (inference)

    if H != E:
        x2 = linear(x.reshape(M, E), params["embed_proj_w"], params["embed_proj_b"])
    else:
        x2 = x.reshape(M, H)

    # --- additive pad mask, [B,1,S]: broadcast over heads / q-rows inside kernel ---
    add_mask = jnp.where(seq == pad_idx, -1e9, 0.0).astype(jnp.float32).reshape(B, 1, S)

    # --- transformer encoder stack (post-LN) ---
    for l in range(n_layers):
        p = params["layers"][l]

        qkv = linear(x2, p["wqkv"], p["bqkv"])                        # [M, 3H]
        # TODO(synk): head split via BlockSpec index_map over the fused 3H dim
        # would remove this relayout; kept as one transpose per layer for clarity.
        qkv = qkv.reshape(B, S, 3, nH, Dh).transpose(2, 0, 3, 1, 4)   # [3,B,nH,S,Dh]
        attn = flash_attention(qkv[0], qkv[1], qkv[2], add_mask, Dh)  # [B,nH,S,Dh]
        attn = attn.transpose(0, 2, 1, 3).reshape(M, H)

        # fused: out-proj + residual + LayerNorm
        x2 = proj_add_layernorm(attn, p["wo"], p["bo"], x2, p["ln1_g"], p["ln1_b"])
        # fused: MLP (gelu) + residual + LayerNorm
        x2 = mlp_add_layernorm(x2, p["w1"], p["b1"], p["w2"], p["b2"],
                               p["ln2_g"], p["ln2_b"])

    # --- ReplacedTokenDetectionHead: Linear(hidden_dim, 2), lane-dense padded ---
    logits = linear(x2, params["cls_w_pad"], params["cls_b_pad"],
                    out_dtype=jnp.float32)                            # [M, 128]
    return logits[:, :2].reshape(B, S, 2)


# ----------------------------------- main --------------------------------------

if __name__ == "__main__":
    vocab_size, n_layers, hidden_dim, mlp_dim = 100, 2, 32, 64
    embed_dim, n_heads, pad_idx = 16, 4, 0
    B, S = 2, 8

    key = jax.random.PRNGKey(0)
    k_params, k_seq = jax.random.split(key)

    params = init_params(
        k_params, vocab_size=vocab_size, n_layers=n_layers, hidden_dim=hidden_dim,
        mlp_dim=mlp_dim, embed_dim=embed_dim, n_heads=n_heads, pad_idx=pad_idx)

    seq = jax.random.randint(k_seq, (B, S), 1, vocab_size, dtype=jnp.int32)
    seq = seq.at[:, -2:].set(pad_idx)                 # add some pad tokens
    seg_ids = jnp.concatenate(
        [jnp.ones((B, S // 2), jnp.int32), 2 * jnp.ones((B, S - S // 2), jnp.int32)],
        axis=1)
    seg_ids = jnp.where(seq == pad_idx, pad_idx, seg_ids)

    out = discriminator_forward(
        params, seq, seg_ids, hidden_dim=hidden_dim, embed_dim=embed_dim,
        n_heads=n_heads, n_layers=n_layers, pad_idx=pad_idx)
    out = jax.block_until_ready(out)

    assert out.shape == (B, S, 2) and out.dtype == jnp.float32
    assert bool(jnp.all(jnp.isfinite(out)))
    print("KERNEL_OK")
</pallas_src>

<mosaic_0001>
module attributes {stable_mosaic.version = 11 : i64} {
  func.func @_linear_bias_kernel(%arg0: i32, %arg1: memref<16x16xbf16, #tpu.memory_space<vmem>>, %arg2: memref<16x32xbf16, #tpu.memory_space<vmem>>, %arg3: memref<1x32xf32, #tpu.memory_space<vmem>>, %arg4: memref<16x32xbf16, #tpu.memory_space<vmem>>) attributes {dimension_semantics = [#tpu.dimension_semantics<parallel>], iteration_bounds = array<i64: 1>, scalar_prefetch = 0 : i64, scratch_operands = 0 : i64, tpu.core_type = #tpu.core_type<tc>, window_params = [{transform_indices = @transform_0, window_bounds = array<i64: 16, 16>}, {pipeline_mode = #tpu.pipeline_mode<synchronous>, transform_indices = @transform_1, window_bounds = array<i64: 16, 32>}, {pipeline_mode = #tpu.pipeline_mode<synchronous>, transform_indices = @transform_2, window_bounds = array<i64: 1, 32>}, {transform_indices = @transform_3, window_bounds = array<i64: 16, 32>}]} {
    %c0 = arith.constant 0 : index
    %c0_0 = arith.constant 0 : index
    %0 = vector.load %arg1[%c0, %c0_0] : memref<16x16xbf16, #tpu.memory_space<vmem>>, vector<16x16xbf16>
    %c0_1 = arith.constant 0 : index
    %c0_2 = arith.constant 0 : index
    %1 = vector.load %arg2[%c0_1, %c0_2] : memref<16x32xbf16, #tpu.memory_space<vmem>>, vector<16x32xbf16>
    %cst = arith.constant dense<0.000000e+00> : vector<16x32xf32>
    %2 = tpu.matmul %0, %1, %cst {dimension_numbers = #tpu.dot_dimension_numbers<[1], [0], [0], [1], [0, 0, 1, 1], [], []>} : vector<16x16xbf16>, vector<16x32xbf16>, vector<16x32xf32> -> vector<16x32xf32>
    %c0_3 = arith.constant 0 : index
    %c0_4 = arith.constant 0 : index
    %3 = vector.load %arg3[%c0_3, %c0_4] : memref<1x32xf32, #tpu.memory_space<vmem>>, vector<1x32xf32>
    %4 = vector.broadcast %3 : vector<1x32xf32> to vector<16x32xf32>
    %5 = arith.addf %2, %4 : vector<16x32xf32>
    %6 = arith.truncf %5 : vector<16x32xf32> to vector<16x32xbf16>
    %c0_5 = arith.constant 0 : index
    %c0_6 = arith.constant 0 : index
    %7 = vector.load %arg4[%c0_5, %c0_6] : memref<16x32xbf16, #tpu.memory_space<vmem>>, vector<16x32xbf16>
    tpu.vector_store %arg4[%c0_5, %c0_6], %6 {strides = array<i32>} : memref<16x32xbf16, #tpu.memory_space<vmem>>, vector<16x32xbf16>,
    return
  }
  func.func @transform_0(%arg0: i32) -> (i32, i32) {
    %c0_i32 = arith.constant 0 : i32
    %c0_i32_0 = arith.constant 0 : i32
    return %arg0, %c0_i32 : i32, i32
  }
  func.func @transform_1(%arg0: i32) -> (i32, i32) {
    %c0_i32 = arith.constant 0 : i32
    %c0_i32_0 = arith.constant 0 : i32
    %c0_i32_1 = arith.constant 0 : i32
    return %c0_i32, %c0_i32_0 : i32, i32
  }
  func.func @transform_2(%arg0: i32) -> (i32, i32) {
    %c0_i32 = arith.constant 0 : i32
    %c0_i32_0 = arith.constant 0 : i32
    %c0_i32_1 = arith.constant 0 : i32
    return %c0_i32, %c0_i32_0 : i32, i32
  }
  func.func @transform_3(%arg0: i32) -> (i32, i32) {
    %c0_i32 = arith.constant 0 : i32
    %c0_i32_0 = arith.constant 0 : i32
    return %arg0, %c0_i32 : i32, i32
  }
}

</mosaic_0001>

<llo_original>
// kernel: tpu_custom_call.1
$region0: #{tpu_custom_call.1}
  #allocation0 [shape = 'u32[]', space=smem, size = 0x4, offset = 0x4, fixed_abs, tag = 'smem constant byte address 0x4 - core index']
  #allocation1 [shape = 'u32[144,128]{1,0:T(1,128)}', space=vmem, size = 0x12000, scoped, tag = 'internal scratch']
  %s0 = inlined_call_operand.hbm [shape: bf16[16,16], index: 0, kind: input, shape index: {}]
  %s1 = inlined_call_operand.hbm [shape: bf16[16,32], index: 1, kind: input, shape index: {}]
  %s2 = inlined_call_operand.vmem [shape: f32[1,32], index: 2, kind: input, shape index: {}]
  %s3 = inlined_call_operand.hbm [shape: bf16[16,32], index: 3, kind: output, shape index: {}]
  %s4 = sld [smem:[#allocation0]]
  $region30: #{tpu_custom_call.1} parent=0
    _
  %s6 = ssub.s32 1, %s4
  %s7 = scalar_select 0, %s6, %s4
  $region1: #{tpu_custom_call.1} parent=0
    #allocation2 [shape = 'u8[4096]{0}', space=vmem, size = 0x1000, scoped, tag = 'input window, operand 0, single buffered']
    #allocation3 [shape = 's32[1]{0}', space=sflag, size = 0x4, scoped, tag = 'scoped memory for tpu_custom_call.1']
    #allocation4 [shape = 's32[1]{0}', space=sflag, size = 0x4, scoped, tag = 'scoped memory for tpu_custom_call.1']
    #allocation5 [shape = 'u8[4096]{0}', space=vmem, size = 0x1000, scoped, tag = 'input window, operand 1, single buffered']
    #allocation6 [shape = 's32[1]{0}', space=sflag, size = 0x4, scoped, tag = 'scoped memory for tpu_custom_call.1']
    #allocation7 [shape = 'u8[4096]{0}', space=vmem, size = 0x1000, scoped, tag = 'output window, operand 0, single buffered']
    %8 = vsyncpa [#allocation3], 0
    %9 = vsyncpa [#allocation6], 0
    %10 = vsyncpa [#allocation4], 0
    // Predicated region
    $region2: #{tpu_custom_call.1} parent=1 // pred_check
      _
    $region3: #{tpu_custom_call.1} parent=1 // pred_check_branch
      %12 = sbr.rel (0) target = $region5
    $region4: #{tpu_custom_call.1} parent=1 // pred_region
      %s14 = ssub.s32 128, 128
      %15 = vsyncadd [#allocation3], %s14
      %s16 = sshll.u32 [#allocation2], 4
      %s17 = int_to_ptr.vmem [resolvable:$true] %s16
      %22 = dma.hbm_to_vmem [thread:$0]  %s0, 128, %s17, [#allocation3], 64, 64, 4
    $region5: #{tpu_custom_call.1} parent=1 // pred_fallthru
      _
    // Predicated region
    $region6: #{tpu_custom_call.1} parent=1 // pred_check
      _
    $region7: #{tpu_custom_call.1} parent=1 // pred_check_branch
      %24 = sbr.rel (0) target = $region9
    $region8: #{tpu_custom_call.1} parent=1 // pred_region
      %s26 = ssub.s32 128, 128
      %27 = vsyncadd [#allocation6], %s26
      %s28 = sshll.u32 [#allocation5], 4
      %s29 = int_to_ptr.vmem [resolvable:$true] %s28
      %34 = dma.hbm_to_vmem [thread:$0]  %s1, 128, %s29, [#allocation6], 64, 64, 4
    $region9: #{tpu_custom_call.1} parent=1 // pred_fallthru
      _
    // Predicated region
    $region10: #{tpu_custom_call.1} parent=1 // pred_check
      _
    $region11: #{tpu_custom_call.1} parent=1 // pred_check_branch
      %36 = sbr.rel (0) target = $region13
    $region12: #{tpu_custom_call.1} parent=1 // pred_region
      _
    $region13: #{tpu_custom_call.1} parent=1 // pred_fallthru
      _
    // Predicated region
    $region14: #{tpu_custom_call.1} parent=1 // pred_check
      _
    $region15: #{tpu_custom_call.1} parent=1 // pred_check_branch
      %38 = sbr.rel (0) target = $region17
    $region16: #{tpu_custom_call.1} parent=1 // pred_region
      %39 = dma.done [#allocation3], 128
    $region17: #{tpu_custom_call.1} parent=1 // pred_fallthru
      _
    // Predicated region
    $region18: #{tpu_custom_call.1} parent=1 // pred_check
      _
    $region19: #{tpu_custom_call.1} parent=1 // pred_check_branch
      %41 = sbr.rel (0) target = $region21
    $region20: #{tpu_custom_call.1} parent=1 // pred_region
      %42 = dma.done [#allocation6], 128
    $region21: #{tpu_custom_call.1} parent=1 // pred_fallthru
      _
    %v44 = vld [vmem:[#allocation2] sm:$0xf]
    %v45 = vld [vmem:[#allocation2 + $0x4] sm:$0xf]
    %v46 = vld [vmem:[#allocation5] sm:$0xf]
    %v47 = vld [vmem:[#allocation5 + $0x4] sm:$0xf]
    %v48 = vld [vmem:[%s2] sm:$0x1]
    %v50 = vlaneseq
    %v51 = vshrl.u32 %v50, 7
    %v52 = vsub.s32 0, %v51
    %v53 = vrot.slane %v48, %v52
    %v57 = vunpack.c.l.b16 %v44
    %v58 = vunpack.c.l.b16 %v45
    %v59 = vpack.c.b16 %v58, %v57
    %v62 = vunpack.c.l.b16 %v46
    %v63 = vunpack.c.l.b16 %v47
    %v64 = vpack.c.b16 %v63, %v62
    %vm66 = vcmask 130048
    %v68 = vsel %vm66, %v59, 0
    %70 = vmatprep.subr.bf16.mxu0 0
    %71 = vmatpush1.bf16.msra.mxu0 %v64
    %72 = vmatprep.subr.bf16.mxu0 0
    %73 = vmatpush1.bf16.msra.mxu0 0
    %74 = vmatprep.subr.bf16.mxu0 0
    %75 = vmatpush1.bf16.msra.mxu0 0
    %76 = vmatprep.subr.bf16.mxu0 0
    %77 = vmatpush1.bf16.msra.mxu0 0
    %78 = vmatprep.subr.bf16.mxu0 0
    %79 = vmatpush1.bf16.msra.mxu0 0
    %80 = vmatprep.subr.bf16.mxu0 0
    %81 = vmatpush1.bf16.msra.mxu0 0
    %82 = vmatprep.subr.bf16.mxu0 0
    %83 = vmatpush1.bf16.msra.mxu0 0
    %84 = vmatprep.subr.bf16.mxu0 0
    %85 = vmatpush1.bf16.msra.mxu0 0
    %86 = vmatprep.subr.bf16.mxu0 0
    %87 = vmatpush1.bf16.msra.mxu0 0
    %88 = vmatprep.subr.bf16.mxu0 0
    %89 = vmatpush1.bf16.msra.mxu0 0
    %90 = vmatprep.subr.bf16.mxu0 0
    %91 = vmatpush1.bf16.msra.mxu0 0
    %92 = vmatprep.subr.bf16.mxu0 0
    %93 = vmatpush1.bf16.msra.mxu0 0
    %94 = vmatprep.subr.bf16.mxu0 0
    %95 = vmatpush1.bf16.msra.mxu0 0
    %96 = vmatprep.subr.bf16.mxu0 0
    %97 = vmatpush1.bf16.msra.mxu0 0
    %98 = vmatprep.subr.bf16.mxu0 0
    %99 = vmatpush1.bf16.msra.mxu0 0
    %100 = vmatprep.subr.bf16.mxu0 0
    %101 = vmatpush1.bf16.msra.mxu0 0
    %102 = vmatprep.mubr.bf16.mxu0 0
    %103 = vmatmul.mubr.bf16.gmra.mrb[0].mxu0 %v68
    %v104 = vpop.f32.mrb[0].mxu0
    %v105 = vadd.f32 %v53, %v104
    %v106 = vpop.f32.mrb[0].mxu0
    %v107 = vpop.f32.mrb[0].mxu0
    %v108 = vadd.f32 %v53, %v107
    %v109 = vpop.f32.mrb[0].mxu0
    %110 = vdwg.mxu0
    %v111 = vpack.c.bf16 %v108, %v105
    %v113 = vunpack.c.l.b16 %v111
    %v114 = vunpack.c.h.b16 %v111
    %v115 = vpack.c.b16 %v113, %v113
    %v116 = vpack.c.b16 %v114, %v114
    %vm119 = vcmask 257024
    %120 = vst.msk [vmem:[#allocation7] sm:$0xf] %vm119, %v115
    %121 = vst.msk [vmem:[#allocation7 + $0x4] sm:$0xf] %vm119, %v116
    // Predicated region
    $region22: #{tpu_custom_call.1} parent=1 // pred_check
      _
    $region23: #{tpu_custom_call.1} parent=1 // pred_check_branch
      %123 = sbr.rel (0) target = $region25
    $region24: #{tpu_custom_call.1} parent=1 // pred_region
      %s125 = ssub.s32 128, 128
      %126 = vsyncadd [#allocation4], %s125
      %s127 = sshll.u32 [#allocation7], 4
      %s128 = int_to_ptr.vmem [resolvable:$true] %s127
      %133 = dma.vmem_to_hbm [thread:$0]  %s128, 128, %s3, [#allocation4], 64, 64, 4
    $region25: #{tpu_custom_call.1} parent=1 // pred_fallthru
      _
    // Predicated region
    $region26: #{tpu_custom_call.1} parent=1 // pred_check
      _
    $region27: #{tpu_custom_call.1} parent=1 // pred_check_branch
      %135 = sbr.rel (0) target = $region29
    $region28: #{tpu_custom_call.1} parent=1 // pred_region
      %136 = dma.done [#allocation4], 128
    $region29: #{tpu_custom_call.1} parent=1 // pred_fallthru
      _
    %137 = vsyncpa [#allocation3], 1
    %138 = vsyncpa [#allocation6], 1
    %139 = vsyncpa [#allocation4], 1

</llo_original>
